<compile_context>
chip_gen: v6e
topology: v6e:2x2x1
jax: 0.10.0
libtpu: 0.0.40
codegen_flags: <defaults>
</compile_context>

<pallas_src>
import math
from functools import partial

import jax
import jax.numpy as jnp
from jax.experimental import pallas as pl
from jax.experimental.pallas import tpu as pltpu


# Purely HBM-bound elementwise add; safe 32 MiB scoped-VMEM cap on every generation
# (v5e/v6e physical 128 MiB, v7x physical 64 MiB).
_VMEM_LIMIT_BYTES = 32 * 1024 * 1024
_VMEM_BLOCK_BUDGET = 8 * 1024 * 1024  # double-buffered working set target


def _round_up(n, m):
    return ((n + m - 1) // m) * m


def _round_down(n, m):
    return max(m, (n // m) * m)


# -----------------------------------------------------------------------------
# Kernel: out = x + pe   (pe broadcasts over the batch tile in the 3-D path)
# -----------------------------------------------------------------------------
def _pe_add_kernel(x_ref, pe_ref, o_ref):
    # 2-D path: x (tm, D) + pe (tm, D)
    # 3-D path: x (ts, tb, D) + pe (ts, 1, D)   -> VPU broadcast over batch tile
    o_ref[...] = (x_ref[...] + pe_ref[...]).astype(o_ref.dtype)


# -----------------------------------------------------------------------------
# Module "buffer": positional-encoding table (built from static values only, so it
# constant-folds under jit). Returned as (max_len, d_model); the wrapper supplies
# the broadcast dim, matching the PyTorch (max_len, 1, d_model) buffer semantics.
# -----------------------------------------------------------------------------
def make_pe_table(d_model, max_len=50, dtype=jnp.float32):
    position = jnp.arange(max_len, dtype=jnp.float32)[:, None]                   # (L, 1)
    div_term = jnp.exp(
        jnp.arange(0, d_model, 2, dtype=jnp.float32) * (-math.log(10000.0) / d_model)
    )                                                                             # (D/2,)
    angles = position * div_term                                                  # (L, D/2)
    pe = jnp.zeros((max_len, d_model), jnp.float32)
    pe = pe.at[:, 0::2].set(jnp.sin(angles))
    pe = pe.at[:, 1::2].set(jnp.cos(angles))
    return pe.astype(dtype)


# -----------------------------------------------------------------------------
# Forward wrapper: one fused pallas_call, layout chosen by batch size
# -----------------------------------------------------------------------------
@partial(jax.jit, static_argnames=("d_model", "max_len"))
def positional_encoding_forward(x, *, d_model, max_len=50):
    S, B, D = x.shape
    assert D == d_model, "last dim of x must equal d_model"
    assert S <= max_len, "sequence length exceeds max_len of the PE buffer"

    # pe depends only on static values -> XLA constant-folds its construction.
    pe = make_pe_table(d_model, max_len, x.dtype)[:S]            # (S, D), x.dtype
    itemsize = jnp.dtype(x.dtype).itemsize
    cparams = dict(vmem_limit_bytes=_VMEM_LIMIT_BYTES)

    if B >= 8 and B % 8 == 0:
        # ------- 3-D path: batch fills the sublane axis at full (8, 128) occupancy
        pe3 = pe[:, None, :]                                     # (S, 1, D)
        ts = min(S, 128)
        # double-buffered bytes per step: 2 * (x_blk + out_blk) + 2 * pe_blk
        tb_max = _round_down(_VMEM_BLOCK_BUDGET // (4 * ts * D * itemsize), 8)
        tb = min(B, tb_max)
        grid = (pl.cdiv(S, ts), pl.cdiv(B, tb))
        return pl.pallas_call(
            _pe_add_kernel,
            out_shape=jax.ShapeDtypeStruct((S, B, D), x.dtype),
            grid_spec=pltpu.PrefetchScalarGridSpec(
                num_scalar_prefetch=0,
                grid=grid,
                in_specs=[
                    pl.BlockSpec((ts, tb, D), lambda i, j: (i, j, 0)),   # x tile
                    pl.BlockSpec((ts, 1, D), lambda i, j: (i, 0, 0)),    # pe resident over batch tiles
                ],
                out_specs=pl.BlockSpec((ts, tb, D), lambda i, j: (i, j, 0)),
            ),
            compiler_params=pltpu.CompilerParams(
                dimension_semantics=("parallel", "parallel"), **cparams
            ),
        )(x, pe3)

    # ------- 2-D path (small batch): flatten to (S*B, D) for dense sublanes/lanes
    rows = S * B
    x2 = x.reshape(rows, D)                                      # contiguous -> free
    # Broadcast pe to the flattened row layout; built from constants -> folded at
    # compile time, no per-call broadcast op.
    pe2 = jnp.broadcast_to(pe[:, None, :], (S, B, D)).reshape(rows, D)

    # double-buffered bytes per step: 2 * (x_blk + pe_blk + out_blk)
    tm_max = _round_down(_VMEM_BLOCK_BUDGET // (6 * D * itemsize), 8)
    tm = min(_round_up(rows, 8), tm_max, 2048)
    grid = (pl.cdiv(rows, tm),)

    out2 = pl.pallas_call(
        _pe_add_kernel,
        out_shape=jax.ShapeDtypeStruct((rows, D), x.dtype),
        grid_spec=pltpu.PrefetchScalarGridSpec(
            num_scalar_prefetch=0,
            grid=grid,
            in_specs=[
                pl.BlockSpec((tm, D), lambda i: (i, 0)),   # x rows
                pl.BlockSpec((tm, D), lambda i: (i, 0)),   # pe rows (pre-broadcast constant)
            ],
            out_specs=pl.BlockSpec((tm, D), lambda i: (i, 0)),
        ),
        compiler_params=pltpu.CompilerParams(
            dimension_semantics=("parallel",), **cparams
        ),
    )(x2, pe2)
    return out2.reshape(S, B, D)


# -----------------------------------------------------------------------------
if __name__ == "__main__":
    D_MODEL, MAX_LEN = 128, 50

    def reference(x):
        pe = make_pe_table(D_MODEL, MAX_LEN, x.dtype)            # (L, D)
        return x + pe[: x.shape[0], None, :]

    key = jax.random.PRNGKey(0)
    k1, k2 = jax.random.split(key)

    # Path 1: small batch (B=2) -> flattened 2-D lane/sublane-dense layout.
    x_small = jax.random.normal(k1, (8, 2, D_MODEL), jnp.float32)
    out_small = positional_encoding_forward(x_small, d_model=D_MODEL, max_len=MAX_LEN)
    jax.block_until_ready(out_small)
    assert out_small.shape == x_small.shape
    assert jnp.allclose(out_small, reference(x_small), atol=1e-6, rtol=1e-6)

    # Path 1 in bf16 (exercises the dtype fix; halves HBM bytes on this mem-bound op).
    x_bf16 = x_small.astype(jnp.bfloat16)
    out_bf16 = positional_encoding_forward(x_bf16, d_model=D_MODEL, max_len=MAX_LEN)
    jax.block_until_ready(out_bf16)
    assert out_bf16.dtype == jnp.bfloat16
    assert jnp.allclose(
        out_bf16.astype(jnp.float32), reference(x_bf16).astype(jnp.float32),
        atol=1e-2, rtol=1e-2,
    )

    # Path 2: batch >= 8 -> 3-D blocks, pe broadcast in-kernel over the batch tile.
    x_big = jax.random.normal(k2, (16, 8, D_MODEL), jnp.float32)
    out_big = positional_encoding_forward(x_big, d_model=D_MODEL, max_len=MAX_LEN)
    jax.block_until_ready(out_big)
    assert out_big.shape == x_big.shape
    assert jnp.allclose(out_big, reference(x_big), atol=1e-6, rtol=1e-6)

    print("KERNEL_OK")
</pallas_src>

<mosaic_0001>
module attributes {stable_mosaic.version = 11 : i64} {
  func.func @_pe_add_kernel(%arg0: i32, %arg1: memref<16x128xf32, #tpu.memory_space<vmem>>, %arg2: memref<16x128xf32, #tpu.memory_space<vmem>>, %arg3: memref<16x128xf32, #tpu.memory_space<vmem>>) attributes {dimension_semantics = [#tpu.dimension_semantics<parallel>], iteration_bounds = array<i64: 1>, scalar_prefetch = 0 : i64, scratch_operands = 0 : i64, tpu.core_type = #tpu.core_type<tc>, window_params = [{transform_indices = @transform_0, window_bounds = array<i64: 16, 128>}, {transform_indices = @transform_1, window_bounds = array<i64: 16, 128>}, {transform_indices = @transform_2, window_bounds = array<i64: 16, 128>}]} {
    %c0 = arith.constant 0 : index
    %c0_0 = arith.constant 0 : index
    %0 = vector.load %arg1[%c0, %c0_0] : memref<16x128xf32, #tpu.memory_space<vmem>>, vector<16x128xf32>
    %c0_1 = arith.constant 0 : index
    %c0_2 = arith.constant 0 : index
    %1 = vector.load %arg2[%c0_1, %c0_2] : memref<16x128xf32, #tpu.memory_space<vmem>>, vector<16x128xf32>
    %2 = arith.addf %0, %1 : vector<16x128xf32>
    %c0_3 = arith.constant 0 : index
    %c0_4 = arith.constant 0 : index
    %3 = vector.load %arg3[%c0_3, %c0_4] : memref<16x128xf32, #tpu.memory_space<vmem>>, vector<16x128xf32>
    tpu.vector_store %arg3[%c0_3, %c0_4], %2 {strides = array<i32>} : memref<16x128xf32, #tpu.memory_space<vmem>>, vector<16x128xf32>,
    return
  }
  func.func @transform_0(%arg0: i32) -> (i32, i32) {
    %c0_i32 = arith.constant 0 : i32
    %c0_i32_0 = arith.constant 0 : i32
    return %arg0, %c0_i32 : i32, i32
  }
  func.func @transform_1(%arg0: i32) -> (i32, i32) {
    %c0_i32 = arith.constant 0 : i32
    %c0_i32_0 = arith.constant 0 : i32
    return %arg0, %c0_i32 : i32, i32
  }
  func.func @transform_2(%arg0: i32) -> (i32, i32) {
    %c0_i32 = arith.constant 0 : i32
    %c0_i32_0 = arith.constant 0 : i32
    return %arg0, %c0_i32 : i32, i32
  }
}

</mosaic_0001>

<llo_original>
// kernel: positional_encoding_forward.1
$region0: #{positional_encoding_forward.1}
  #allocation0 [shape = 'u32[]', space=smem, size = 0x4, offset = 0x4, fixed_abs, tag = 'smem constant byte address 0x4 - core index']
  #allocation1 [shape = 'u32[144,128]{1,0:T(1,128)}', space=vmem, size = 0x12000, scoped, tag = 'internal scratch']
  %s0 = inlined_call_operand.vmem [shape: f32[16,128], index: 0, kind: input, shape index: {}]
  %s1 = inlined_call_operand.vmem [shape: f32[16,128], index: 1, kind: input, shape index: {}]
  %s2 = inlined_call_operand.hbm [shape: f32[16,128], index: 2, kind: output, shape index: {}]
  %s3 = sld [smem:[#allocation0]]
  $region18: #{positional_encoding_forward.1} parent=0
    _
  %s5 = ssub.s32 1, %s3
  %s6 = scalar_select 0, %s5, %s3
  $region1: #{positional_encoding_forward.1} parent=0
    #allocation2 [shape = 'u8[8192]{0}', space=vmem, size = 0x2000, scoped, tag = 'output window, operand 0, single buffered']
    #allocation3 [shape = 's32[1]{0}', space=sflag, size = 0x4, scoped, tag = 'scoped memory for positional_encoding_forward.1']
    %7 = vsyncpa [#allocation3], 0
    // Predicated region
    $region2: #{positional_encoding_forward.1} parent=1 // pred_check
      _
    $region3: #{positional_encoding_forward.1} parent=1 // pred_check_branch
      %9 = sbr.rel (0) target = $region5
    $region4: #{positional_encoding_forward.1} parent=1 // pred_region
      _
    $region5: #{positional_encoding_forward.1} parent=1 // pred_fallthru
      _
    // Predicated region
    $region6: #{positional_encoding_forward.1} parent=1 // pred_check
      _
    $region7: #{positional_encoding_forward.1} parent=1 // pred_check_branch
      %11 = sbr.rel (0) target = $region9
    $region8: #{positional_encoding_forward.1} parent=1 // pred_region
      _
    $region9: #{positional_encoding_forward.1} parent=1 // pred_fallthru
      _
    %v12 = vld [vmem:[%s0] sm:$0xff]
    %v13 = vld [vmem:[%s0 + $0x8] sm:$0xff]
    %v14 = vld [vmem:[%s1] sm:$0xff]
    %v15 = vld [vmem:[%s1 + $0x8] sm:$0xff]
    %v16 = vadd.f32 %v12, %v14
    %v17 = vadd.f32 %v13, %v15
    %18 = vst [vmem:[#allocation2] sm:$0xff] %v16
    %19 = vst [vmem:[#allocation2 + $0x8] sm:$0xff] %v17
    // Predicated region
    $region10: #{positional_encoding_forward.1} parent=1 // pred_check
      _
    $region11: #{positional_encoding_forward.1} parent=1 // pred_check_branch
      %21 = sbr.rel (0) target = $region13
    $region12: #{positional_encoding_forward.1} parent=1 // pred_region
      %s23 = ssub.s32 256, 256
      %24 = vsyncadd [#allocation3], %s23
      %s25 = sshll.u32 [#allocation2], 4
      %s26 = int_to_ptr.vmem [resolvable:$true] %s25
      %31 = dma.vmem_to_hbm [thread:$0]  %s26, 256, %s2, [#allocation3], 128, 128, 8
    $region13: #{positional_encoding_forward.1} parent=1 // pred_fallthru
      _
    // Predicated region
    $region14: #{positional_encoding_forward.1} parent=1 // pred_check
      _
    $region15: #{positional_encoding_forward.1} parent=1 // pred_check_branch
      %33 = sbr.rel (0) target = $region17
    $region16: #{positional_encoding_forward.1} parent=1 // pred_region
      %34 = dma.done [#allocation3], 256
    $region17: #{positional_encoding_forward.1} parent=1 // pred_fallthru
      _
    %35 = vsyncpa [#allocation3], 1

</llo_original>
